<compile_context>
chip_gen: v6e
topology: v6e:2x2x1
jax: 0.10.0
libtpu: 0.0.40
codegen_flags: <defaults>
</compile_context>

<pallas_src>
import jax
import jax.numpy as jnp
from jax import lax
from jax.experimental import pallas as pl
from jax.experimental.pallas import tpu as pltpu


_LANE = 128
_EPS = 1e-5
_NEG_SLOPE = 0.2
# Conservative scoped-VMEM budget that works on v5e/v6e and within v7x's 64 MiB.
_VMEM_LIMIT = 32 * 1024 * 1024


def _round_up(x, m):
    return (x + m - 1) // m * m


# ---------------- phase 1: conv tile (MXU) + per-tile BN partial statistics ----------------
def _conv_stats_kernel(p_ref, w_ref, conv_ref, sum_ref, sq_ref):
    # p_ref: [TM, K] bf16 patches tile;  w_ref: [K, C_pad] bf16
    conv = jnp.dot(p_ref[...], w_ref[...], preferred_element_type=jnp.float32)
    conv_ref[...] = conv
    s = jnp.sum(conv, axis=0).reshape(1, 1, -1)
    ss = jnp.sum(conv * conv, axis=0).reshape(1, 1, -1)
    # (8,128)-shaped partial-stat tiles; only sublane row 0 is consumed outside.
    sum_ref[...] = jnp.broadcast_to(s, sum_ref.shape)
    sq_ref[...] = jnp.broadcast_to(ss, sq_ref.shape)


# ---------------- phase 2: folded BatchNorm affine + LeakyReLU(0.2) ----------------
def _bn_lrelu_kernel(conv_ref, scale_ref, shift_ref, o_ref):
    y = conv_ref[...] * scale_ref[...] + shift_ref[...]
    o_ref[...] = jnp.where(y >= 0, y, _NEG_SLOPE * y).astype(o_ref.dtype)


def _im2col_nhwc(x, kh=4, kw=4, stride=2, pad=1, dtype=jnp.bfloat16):
    """x: [N, C, H, W] -> patches [M, kh*kw*C] (feature order kh, kw, C), bf16."""
    n, c, h, w = x.shape
    h_out = (h + 2 * pad - kh) // stride + 1
    w_out = (w + 2 * pad - kw) // stride + 1
    xn = jnp.transpose(x, (0, 2, 3, 1)).astype(dtype)          # NHWC (small transpose)
    xp = jnp.pad(xn, ((0, 0), (pad, pad), (pad, pad), (0, 0)))
    slabs = []
    for i in range(kh):
        for j in range(kw):
            slabs.append(xp[:, i:i + stride * h_out:stride,
                            j:j + stride * w_out:stride, :])    # [N, H_out, W_out, C]
    patches = jnp.stack(slabs, axis=3)                          # [N, H_out, W_out, kh*kw, C]
    return patches.reshape(n * h_out * w_out, kh * kw * c), (n, h_out, w_out)


def conv_block_forward(x, weight, bias, gamma, beta, *, m_tile=1024):
    """x: [N, C_in, H, W]; weight: [C_out, C_in, 4, 4]; bias/gamma/beta: [C_out]."""
    # A per-channel conv bias is algebraically cancelled by the BatchNorm mean
    # subtraction, so it is intentionally unused (free, semantics-preserving).
    del bias
    c_out, _, kh, kw = weight.shape
    patches, (n, h_out, w_out) = _im2col_nhwc(x, kh=kh, kw=kw)
    m, k = patches.shape

    c_pad = _round_up(c_out, _LANE)
    tm = min(m_tile, _round_up(m, 8))
    m_pad = _round_up(m, tm)
    num_tiles = m_pad // tm
    if m_pad != m:
        patches = jnp.pad(patches, ((0, m_pad - m), (0, 0)))    # zero rows: exact BN stats

    # weight [C_out, C_in, kh, kw] -> [kh, kw, C_in, C_out] -> [K, C_pad] (matches patch order)
    w_mat = jnp.transpose(weight, (2, 3, 1, 0)).reshape(k, c_out)
    w_mat = jnp.pad(w_mat, ((0, 0), (0, c_pad - c_out))).astype(jnp.bfloat16)

    cp = pltpu.CompilerParams(dimension_semantics=("parallel",),
                              vmem_limit_bytes=_VMEM_LIMIT)

    conv, psum, psq = pl.pallas_call(
        _conv_stats_kernel,
        out_shape=(
            jax.ShapeDtypeStruct((m_pad, c_pad), jnp.float32),
            jax.ShapeDtypeStruct((num_tiles, 8, c_pad), jnp.float32),
            jax.ShapeDtypeStruct((num_tiles, 8, c_pad), jnp.float32),
        ),
        grid=(num_tiles,),
        in_specs=[
            pl.BlockSpec((tm, k), lambda i: (i, 0)),
            pl.BlockSpec((k, c_pad), lambda i: (0, 0)),
        ],
        out_specs=(
            pl.BlockSpec((tm, c_pad), lambda i: (i, 0)),
            pl.BlockSpec((1, 8, c_pad), lambda i: (i, 0, 0)),
            pl.BlockSpec((1, 8, c_pad), lambda i: (i, 0, 0)),
        ),
        compiler_params=cp,
    )(patches, w_mat)

    # Finalize BatchNorm statistics (tiny per-channel math in plain JAX, f32).
    total = jnp.sum(psum[:, 0, :], axis=0)
    total_sq = jnp.sum(psq[:, 0, :], axis=0)
    mean = total / m
    var = jnp.maximum(total_sq / m - mean * mean, 0.0)          # biased variance
    inv_std = lax.rsqrt(var + _EPS)

    gamma_p = jnp.pad(gamma.astype(jnp.float32), (0, c_pad - c_out))
    beta_p = jnp.pad(beta.astype(jnp.float32), (0, c_pad - c_out))
    scale = (gamma_p * inv_std).reshape(1, c_pad)
    shift = (beta_p - mean * gamma_p * inv_std).reshape(1, c_pad)

    out_flat = pl.pallas_call(
        _bn_lrelu_kernel,
        out_shape=jax.ShapeDtypeStruct((m_pad, c_pad), jnp.float32),
        grid=(num_tiles,),
        in_specs=[
            pl.BlockSpec((tm, c_pad), lambda i: (i, 0)),
            pl.BlockSpec((1, c_pad), lambda i: (0, 0)),
            pl.BlockSpec((1, c_pad), lambda i: (0, 0)),
        ],
        out_specs=pl.BlockSpec((tm, c_pad), lambda i: (i, 0)),
        compiler_params=cp,
    )(conv, scale, shift)

    out = out_flat[:m, :c_out].reshape(n, h_out, w_out, c_out)
    return jnp.transpose(out, (0, 3, 1, 2))                     # NCHW


def _reference(x, weight, bias, gamma, beta):
    # Pure-JAX f32 reference (keeps the conv bias to verify it cancels under BN).
    conv = lax.conv_general_dilated(
        x, weight, window_strides=(2, 2), padding=((1, 1), (1, 1)),
        dimension_numbers=("NCHW", "OIHW", "NCHW"))
    conv = conv + bias[None, :, None, None]
    mean = jnp.mean(conv, axis=(0, 2, 3), keepdims=True)
    var = jnp.mean((conv - mean) ** 2, axis=(0, 2, 3), keepdims=True)
    y = gamma[None, :, None, None] * (conv - mean) / jnp.sqrt(var + _EPS) \
        + beta[None, :, None, None]
    return jnp.where(y >= 0, y, _NEG_SLOPE * y)


if __name__ == "__main__":
    N, C_IN, H, W = 2, 4, 16, 16
    C_OUT = 8

    key = jax.random.PRNGKey(0)
    kx, kw, kb, kg, kbe = jax.random.split(key, 5)

    x = jax.random.normal(kx, (N, C_IN, H, W), dtype=jnp.float32)
    weight = jax.random.normal(kw, (C_OUT, C_IN, 4, 4), dtype=jnp.float32) * 0.1
    bias = jax.random.normal(kb, (C_OUT,), dtype=jnp.float32) * 0.1
    gamma = 1.0 + 0.1 * jax.random.normal(kg, (C_OUT,), dtype=jnp.float32)
    beta = 0.1 * jax.random.normal(kbe, (C_OUT,), dtype=jnp.float32)

    fwd = jax.jit(conv_block_forward)
    out = jax.block_until_ready(fwd(x, weight, bias, gamma, beta))

    ref = _reference(x, weight, bias, gamma, beta)
    assert out.shape == (N, C_OUT, H // 2, W // 2)
    # Tolerance accounts for bf16 matmul inputs (f32 accumulation & f32 BN math).
    assert jnp.allclose(out, ref, atol=5e-2, rtol=5e-2), float(jnp.max(jnp.abs(out - ref)))

    print("KERNEL_OK")
</pallas_src>

<mosaic_0001>
module attributes {stable_mosaic.version = 11 : i64} {
  func.func @_bn_lrelu_kernel(%arg0: i32, %arg1: memref<128x128xf32, #tpu.memory_space<vmem>>, %arg2: memref<1x128xf32, #tpu.memory_space<vmem>>, %arg3: memref<1x128xf32, #tpu.memory_space<vmem>>, %arg4: memref<128x128xf32, #tpu.memory_space<vmem>>) attributes {dimension_semantics = [#tpu.dimension_semantics<parallel>], iteration_bounds = array<i64: 1>, scalar_prefetch = 0 : i64, scratch_operands = 0 : i64, tpu.core_type = #tpu.core_type<tc>, window_params = [{transform_indices = @transform_0, window_bounds = array<i64: 128, 128>}, {pipeline_mode = #tpu.pipeline_mode<synchronous>, transform_indices = @transform_1, window_bounds = array<i64: 1, 128>}, {pipeline_mode = #tpu.pipeline_mode<synchronous>, transform_indices = @transform_2, window_bounds = array<i64: 1, 128>}, {transform_indices = @transform_3, window_bounds = array<i64: 128, 128>}]} {
    %c0 = arith.constant 0 : index
    %c0_0 = arith.constant 0 : index
    %0 = vector.load %arg1[%c0, %c0_0] : memref<128x128xf32, #tpu.memory_space<vmem>>, vector<128x128xf32>
    %c0_1 = arith.constant 0 : index
    %c0_2 = arith.constant 0 : index
    %1 = vector.load %arg2[%c0_1, %c0_2] : memref<1x128xf32, #tpu.memory_space<vmem>>, vector<1x128xf32>
    %2 = vector.broadcast %1 : vector<1x128xf32> to vector<128x128xf32>
    %3 = arith.mulf %0, %2 : vector<128x128xf32>
    %c0_3 = arith.constant 0 : index
    %c0_4 = arith.constant 0 : index
    %4 = vector.load %arg3[%c0_3, %c0_4] : memref<1x128xf32, #tpu.memory_space<vmem>>, vector<1x128xf32>
    %5 = vector.broadcast %4 : vector<1x128xf32> to vector<128x128xf32>
    %6 = arith.addf %3, %5 : vector<128x128xf32>
    %cst = arith.constant 0.000000e+00 : f32
    %7 = vector.broadcast %cst : f32 to vector<128x128xf32>
    %8 = arith.cmpf oge, %6, %7 : vector<128x128xf32>
    %cst_5 = arith.constant 2.000000e-01 : f32
    %9 = vector.broadcast %cst_5 : f32 to vector<128x128xf32>
    %10 = arith.mulf %9, %6 : vector<128x128xf32>
    %11 = arith.select %8, %6, %10 : vector<128x128xi1>, vector<128x128xf32>
    %c0_6 = arith.constant 0 : index
    %c0_7 = arith.constant 0 : index
    %12 = vector.load %arg4[%c0_6, %c0_7] : memref<128x128xf32, #tpu.memory_space<vmem>>, vector<128x128xf32>
    tpu.vector_store %arg4[%c0_6, %c0_7], %11 {strides = array<i32>} : memref<128x128xf32, #tpu.memory_space<vmem>>, vector<128x128xf32>,
    return
  }
  func.func @transform_0(%arg0: i32) -> (i32, i32) {
    %c0_i32 = arith.constant 0 : i32
    %c0_i32_0 = arith.constant 0 : i32
    return %arg0, %c0_i32 : i32, i32
  }
  func.func @transform_1(%arg0: i32) -> (i32, i32) {
    %c0_i32 = arith.constant 0 : i32
    %c0_i32_0 = arith.constant 0 : i32
    %c0_i32_1 = arith.constant 0 : i32
    return %c0_i32, %c0_i32_0 : i32, i32
  }
  func.func @transform_2(%arg0: i32) -> (i32, i32) {
    %c0_i32 = arith.constant 0 : i32
    %c0_i32_0 = arith.constant 0 : i32
    %c0_i32_1 = arith.constant 0 : i32
    return %c0_i32, %c0_i32_0 : i32, i32
  }
  func.func @transform_3(%arg0: i32) -> (i32, i32) {
    %c0_i32 = arith.constant 0 : i32
    %c0_i32_0 = arith.constant 0 : i32
    return %arg0, %c0_i32 : i32, i32
  }
}

module attributes {stable_mosaic.version = 11 : i64} {
  func.func @_conv_stats_kernel(%arg0: i32, %arg1: memref<128x64xbf16, #tpu.memory_space<vmem>>, %arg2: memref<64x128xbf16, #tpu.memory_space<vmem>>, %arg3: memref<128x128xf32, #tpu.memory_space<vmem>>, %arg4: memref<1x8x128xf32, #tpu.memory_space<vmem>>, %arg5: memref<1x8x128xf32, #tpu.memory_space<vmem>>) attributes {dimension_semantics = [#tpu.dimension_semantics<parallel>], iteration_bounds = array<i64: 1>, scalar_prefetch = 0 : i64, scratch_operands = 0 : i64, tpu.core_type = #tpu.core_type<tc>, window_params = [{transform_indices = @transform_0, window_bounds = array<i64: 128, 64>}, {pipeline_mode = #tpu.pipeline_mode<synchronous>, transform_indices = @transform_1, window_bounds = array<i64: 64, 128>}, {transform_indices = @transform_2, window_bounds = array<i64: 128, 128>}, {transform_indices = @transform_3, window_bounds = array<i64: 1, 8, 128>}, {transform_indices = @transform_4, window_bounds = array<i64: 1, 8, 128>}]} {
    %c0 = arith.constant 0 : index
    %c0_0 = arith.constant 0 : index
    %0 = vector.load %arg1[%c0, %c0_0] : memref<128x64xbf16, #tpu.memory_space<vmem>>, vector<128x64xbf16>
    %c0_1 = arith.constant 0 : index
    %c0_2 = arith.constant 0 : index
    %1 = vector.load %arg2[%c0_1, %c0_2] : memref<64x128xbf16, #tpu.memory_space<vmem>>, vector<64x128xbf16>
    %cst = arith.constant dense<0.000000e+00> : vector<128x128xf32>
    %2 = tpu.matmul %0, %1, %cst {dimension_numbers = #tpu.dot_dimension_numbers<[1], [0], [0], [1], [0, 0, 1, 1], [], []>} : vector<128x64xbf16>, vector<64x128xbf16>, vector<128x128xf32> -> vector<128x128xf32>
    %c0_3 = arith.constant 0 : index
    %c0_4 = arith.constant 0 : index
    %3 = vector.load %arg3[%c0_3, %c0_4] : memref<128x128xf32, #tpu.memory_space<vmem>>, vector<128x128xf32>
    tpu.vector_store %arg3[%c0_3, %c0_4], %2 {strides = array<i32>} : memref<128x128xf32, #tpu.memory_space<vmem>>, vector<128x128xf32>,
    %cst_5 = arith.constant dense<0.000000e+00> : vector<128xf32>
    %4 = vector.multi_reduction <add>, %2, %cst_5 [0] : vector<128x128xf32> to vector<128xf32>
    %5 = vector.shape_cast %4 : vector<128xf32> to vector<1x1x128xf32>
    %6 = arith.mulf %2, %2 : vector<128x128xf32>
    %cst_6 = arith.constant dense<0.000000e+00> : vector<128xf32>
    %7 = vector.multi_reduction <add>, %6, %cst_6 [0] : vector<128x128xf32> to vector<128xf32>
    %8 = vector.shape_cast %7 : vector<128xf32> to vector<1x1x128xf32>
    %9 = vector.shape_cast %5 : vector<1x1x128xf32> to vector<1x1x128xf32>
    %10 = vector.broadcast %9 : vector<1x1x128xf32> to vector<1x8x128xf32>
    %c0_7 = arith.constant 0 : index
    %c0_8 = arith.constant 0 : index
    %c0_9 = arith.constant 0 : index
    %11 = vector.load %arg4[%c0_7, %c0_8, %c0_9] : memref<1x8x128xf32, #tpu.memory_space<vmem>>, vector<1x8x128xf32>
    tpu.vector_store %arg4[%c0_7, %c0_8, %c0_9], %10 {strides = array<i32>} : memref<1x8x128xf32, #tpu.memory_space<vmem>>, vector<1x8x128xf32>,
    %12 = vector.shape_cast %8 : vector<1x1x128xf32> to vector<1x1x128xf32>
    %13 = vector.broadcast %12 : vector<1x1x128xf32> to vector<1x8x128xf32>
    %c0_10 = arith.constant 0 : index
    %c0_11 = arith.constant 0 : index
    %c0_12 = arith.constant 0 : index
    %14 = vector.load %arg5[%c0_10, %c0_11, %c0_12] : memref<1x8x128xf32, #tpu.memory_space<vmem>>, vector<1x8x128xf32>
    tpu.vector_store %arg5[%c0_10, %c0_11, %c0_12], %13 {strides = array<i32>} : memref<1x8x128xf32, #tpu.memory_space<vmem>>, vector<1x8x128xf32>,
    return
  }
  func.func @transform_0(%arg0: i32) -> (i32, i32) {
    %c0_i32 = arith.constant 0 : i32
    %c0_i32_0 = arith.constant 0 : i32
    return %arg0, %c0_i32 : i32, i32
  }
  func.func @transform_1(%arg0: i32) -> (i32, i32) {
    %c0_i32 = arith.constant 0 : i32
    %c0_i32_0 = arith.constant 0 : i32
    %c0_i32_1 = arith.constant 0 : i32
    return %c0_i32, %c0_i32_0 : i32, i32
  }
  func.func @transform_2(%arg0: i32) -> (i32, i32) {
    %c0_i32 = arith.constant 0 : i32
    %c0_i32_0 = arith.constant 0 : i32
    return %arg0, %c0_i32 : i32, i32
  }
  func.func @transform_3(%arg0: i32) -> (i32, i32, i32) {
    %c0_i32 = arith.constant 0 : i32
    %c0_i32_0 = arith.constant 0 : i32
    %c0_i32_1 = arith.constant 0 : i32
    return %arg0, %c0_i32, %c0_i32_0 : i32, i32, i32
  }
  func.func @transform_4(%arg0: i32) -> (i32, i32, i32) {
    %c0_i32 = arith.constant 0 : i32
    %c0_i32_0 = arith.constant 0 : i32
    %c0_i32_1 = arith.constant 0 : i32
    return %arg0, %c0_i32, %c0_i32_0 : i32, i32, i32
  }
}

</mosaic_0001>

<llo_original>
// kernel: conv_block_forward.3
$region0: #{conv_block_forward.3}
  #allocation0 [shape = 'u32[]', space=smem, size = 0x4, offset = 0x4, fixed_abs, tag = 'smem constant byte address 0x4 - core index']
  #allocation1 [shape = 'u32[144,128]{1,0:T(1,128)}', space=vmem, size = 0x12000, scoped, tag = 'internal scratch']
  %s0 = inlined_call_operand.vmem [shape: f32[128,128], index: 0, kind: input, shape index: {}]
  %s1 = inlined_call_operand.vmem [shape: f32[1,128], index: 1, kind: input, shape index: {}]
  %s2 = inlined_call_operand.vmem [shape: f32[1,128], index: 2, kind: input, shape index: {}]
  %s3 = inlined_call_operand.vmem [shape: f32[128,128], index: 3, kind: output, shape index: {}]
  %s4 = sld [smem:[#allocation0]]
  $region22: #{conv_block_forward.3} parent=0
    _
  %s6 = ssub.s32 1, %s4
  %s7 = scalar_select 0, %s6, %s4
  // Predicated region
  $region2: #{conv_block_forward.3} parent=0 // pred_check
    _
  $region3: #{conv_block_forward.3} parent=0 // pred_check_branch
    %9 = sbr.rel (0) target = $region5
  $region4: #{conv_block_forward.3} parent=0 // pred_region
    _
  $region5: #{conv_block_forward.3} parent=0 // pred_fallthru
    _
  // Predicated region
  $region6: #{conv_block_forward.3} parent=0 // pred_check
    _
  $region7: #{conv_block_forward.3} parent=0 // pred_check_branch
    %11 = sbr.rel (0) target = $region9
  $region8: #{conv_block_forward.3} parent=0 // pred_region
    _
  $region9: #{conv_block_forward.3} parent=0 // pred_fallthru
    _
  // Predicated region
  $region10: #{conv_block_forward.3} parent=0 // pred_check
    _
  $region11: #{conv_block_forward.3} parent=0 // pred_check_branch
    %13 = sbr.rel (0) target = $region13
  $region12: #{conv_block_forward.3} parent=0 // pred_region
    _
  $region13: #{conv_block_forward.3} parent=0 // pred_fallthru
    _
  %v14 = vld [vmem:[%s0] sm:$0xff]
  %v15 = vld [vmem:[%s0 + $0x8] sm:$0xff]
  %v16 = vld [vmem:[%s0 + $0x10] sm:$0xff]
  %v17 = vld [vmem:[%s0 + $0x18] sm:$0xff]
  %v18 = vld [vmem:[%s0 + $0x20] sm:$0xff]
  %v19 = vld [vmem:[%s0 + $0x28] sm:$0xff]
  %v20 = vld [vmem:[%s0 + $0x30] sm:$0xff]
  %v21 = vld [vmem:[%s0 + $0x38] sm:$0xff]
  %v22 = vld [vmem:[%s0 + $0x40] sm:$0xff]
  %v23 = vld [vmem:[%s0 + $0x48] sm:$0xff]
  %v24 = vld [vmem:[%s0 + $0x50] sm:$0xff]
  %v25 = vld [vmem:[%s0 + $0x58] sm:$0xff]
  %v26 = vld [vmem:[%s0 + $0x60] sm:$0xff]
  %v27 = vld [vmem:[%s0 + $0x68] sm:$0xff]
  %v28 = vld [vmem:[%s0 + $0x70] sm:$0xff]
  %v29 = vld [vmem:[%s0 + $0x78] sm:$0xff]
  %v30 = vld [vmem:[%s1] sm:$0x1]
  %v32 = vlaneseq
  %v33 = vshrl.u32 %v32, 7
  %v34 = vsub.s32 0, %v33
  %v35 = vrot.slane %v30, %v34
  %v37 = vmul.f32 %v14, %v35
  %v38 = vmul.f32 %v15, %v35
  %v39 = vmul.f32 %v16, %v35
  %v40 = vmul.f32 %v17, %v35
  %v41 = vmul.f32 %v18, %v35
  %v42 = vmul.f32 %v19, %v35
  %v43 = vmul.f32 %v20, %v35
  %v44 = vmul.f32 %v21, %v35
  %v45 = vmul.f32 %v22, %v35
  %v46 = vmul.f32 %v23, %v35
  %v47 = vmul.f32 %v24, %v35
  %v48 = vmul.f32 %v25, %v35
  %v49 = vmul.f32 %v26, %v35
  %v50 = vmul.f32 %v27, %v35
  %v51 = vmul.f32 %v28, %v35
  %v52 = vmul.f32 %v29, %v35
  %v53 = vld [vmem:[%s2] sm:$0x1]
  %v55 = vlaneseq
  %v56 = vshrl.u32 %v55, 7
  %v57 = vsub.s32 0, %v56
  %v58 = vrot.slane %v53, %v57
  %v60 = vadd.f32 %v37, %v58
  %v61 = vadd.f32 %v38, %v58
  %v62 = vadd.f32 %v39, %v58
  %v63 = vadd.f32 %v40, %v58
  %v64 = vadd.f32 %v41, %v58
  %v65 = vadd.f32 %v42, %v58
  %v66 = vadd.f32 %v43, %v58
  %v67 = vadd.f32 %v44, %v58
  %v68 = vadd.f32 %v45, %v58
  %v69 = vadd.f32 %v46, %v58
  %v70 = vadd.f32 %v47, %v58
  %v71 = vadd.f32 %v48, %v58
  %v72 = vadd.f32 %v49, %v58
  %v73 = vadd.f32 %v50, %v58
  %v74 = vadd.f32 %v51, %v58
  %v75 = vadd.f32 %v52, %v58
  %vm76 = vcmp.ge.f32.partialorder %v60, 0.0
  %vm77 = vcmp.ge.f32.partialorder %v61, 0.0
  %vm78 = vcmp.ge.f32.partialorder %v62, 0.0
  %vm79 = vcmp.ge.f32.partialorder %v63, 0.0
  %vm80 = vcmp.ge.f32.partialorder %v64, 0.0
  %vm81 = vcmp.ge.f32.partialorder %v65, 0.0
  %vm82 = vcmp.ge.f32.partialorder %v66, 0.0
  %vm83 = vcmp.ge.f32.partialorder %v67, 0.0
  %vm84 = vcmp.ge.f32.partialorder %v68, 0.0
  %vm85 = vcmp.ge.f32.partialorder %v69, 0.0
  %vm86 = vcmp.ge.f32.partialorder %v70, 0.0
  %vm87 = vcmp.ge.f32.partialorder %v71, 0.0
  %vm88 = vcmp.ge.f32.partialorder %v72, 0.0
  %vm89 = vcmp.ge.f32.partialorder %v73, 0.0
  %vm90 = vcmp.ge.f32.partialorder %v74, 0.0
  %vm91 = vcmp.ge.f32.partialorder %v75, 0.0
  %v92 = vmul.f32 %v60, 0.2
  %v93 = vmul.f32 %v61, 0.2
  %v94 = vmul.f32 %v62, 0.2
  %v95 = vmul.f32 %v63, 0.2
  %v96 = vmul.f32 %v64, 0.2
  %v97 = vmul.f32 %v65, 0.2
  %v98 = vmul.f32 %v66, 0.2
  %v99 = vmul.f32 %v67, 0.2
  %v100 = vmul.f32 %v68, 0.2
  %v101 = vmul.f32 %v69, 0.2
  %v102 = vmul.f32 %v70, 0.2
  %v103 = vmul.f32 %v71, 0.2
  %v104 = vmul.f32 %v72, 0.2
  %v105 = vmul.f32 %v73, 0.2
  %v106 = vmul.f32 %v74, 0.2
  %v107 = vmul.f32 %v75, 0.2
  %v108 = vsel %vm76, %v60, %v92
  %v109 = vsel %vm77, %v61, %v93
  %v110 = vsel %vm78, %v62, %v94
  %v111 = vsel %vm79, %v63, %v95
  %v112 = vsel %vm80, %v64, %v96
  %v113 = vsel %vm81, %v65, %v97
  %v114 = vsel %vm82, %v66, %v98
  %v115 = vsel %vm83, %v67, %v99
  %v116 = vsel %vm84, %v68, %v100
  %v117 = vsel %vm85, %v69, %v101
  %v118 = vsel %vm86, %v70, %v102
  %v119 = vsel %vm87, %v71, %v103
  %v120 = vsel %vm88, %v72, %v104
  %v121 = vsel %vm89, %v73, %v105
  %v122 = vsel %vm90, %v74, %v106
  %v123 = vsel %vm91, %v75, %v107
  %124 = vst [vmem:[%s3] sm:$0xff] %v108
  %125 = vst [vmem:[%s3 + $0x8] sm:$0xff] %v109
  %126 = vst [vmem:[%s3 + $0x10] sm:$0xff] %v110
  %127 = vst [vmem:[%s3 + $0x18] sm:$0xff] %v111
  %128 = vst [vmem:[%s3 + $0x20] sm:$0xff] %v112
  %129 = vst [vmem:[%s3 + $0x28] sm:$0xff] %v113
  %130 = vst [vmem:[%s3 + $0x30] sm:$0xff] %v114
  %131 = vst [vmem:[%s3 + $0x38] sm:$0xff] %v115
  %132 = vst [vmem:[%s3 + $0x40] sm:$0xff] %v116
  %133 = vst [vmem:[%s3 + $0x48] sm:$0xff] %v117
  %134 = vst [vmem:[%s3 + $0x50] sm:$0xff] %v118
  %135 = vst [vmem:[%s3 + $0x58] sm:$0xff] %v119
  %136 = vst [vmem:[%s3 + $0x60] sm:$0xff] %v120
  %137 = vst [vmem:[%s3 + $0x68] sm:$0xff] %v121
  %138 = vst [vmem:[%s3 + $0x70] sm:$0xff] %v122
  %139 = vst [vmem:[%s3 + $0x78] sm:$0xff] %v123
  // Predicated region
  $region14: #{conv_block_forward.3} parent=0 // pred_check
    _
  $region15: #{conv_block_forward.3} parent=0 // pred_check_branch
    %141 = sbr.rel (0) target = $region17
  $region16: #{conv_block_forward.3} parent=0 // pred_region
    _
  $region17: #{conv_block_forward.3} parent=0 // pred_fallthru
    _
  // Predicated region
  $region18: #{conv_block_forward.3} parent=0 // pred_check
    _
  $region19: #{conv_block_forward.3} parent=0 // pred_check_branch
    %143 = sbr.rel (0) target = $region21
  $region20: #{conv_block_forward.3} parent=0 // pred_region
    _
  $region21: #{conv_block_forward.3} parent=0 // pred_fallthru
    _

// kernel: conv_block_forward.2
$region0: #{conv_block_forward.2}
  #allocation0 [shape = 'u32[]', space=smem, size = 0x4, offset = 0x4, fixed_abs, tag = 'smem constant byte address 0x4 - core index']
  #allocation1 [shape = 'u32[144,128]{1,0:T(1,128)}', space=vmem, size = 0x12000, scoped, tag = 'internal scratch']
  %s0 = inlined_call_operand.vmem [shape: bf16[128,64], index: 0, kind: input, shape index: {}]
  %s1 = inlined_call_operand.vmem [shape: bf16[64,128], index: 1, kind: input, shape index: {}]
  %s2 = inlined_call_operand.vmem [shape: f32[128,128], index: 2, kind: output, shape index: {0}]
  %s3 = inlined_call_operand.vmem [shape: f32[1,8,128], index: 3, kind: output, shape index: {1}]
  %s4 = inlined_call_operand.vmem [shape: f32[1,8,128], index: 4, kind: output, shape index: {2}]
  %5 = xla_tuple %s2, %s3, %s4
  %s6 = sld [smem:[#allocation0]]
  $region34: #{conv_block_forward.2} parent=0
    _
  %s8 = ssub.s32 1, %s6
  %s9 = scalar_select 0, %s8, %s6
  // Predicated region
  $region2: #{conv_block_forward.2} parent=0 // pred_check
    _
  $region3: #{conv_block_forward.2} parent=0 // pred_check_branch
    %11 = sbr.rel (0) target = $region5
  $region4: #{conv_block_forward.2} parent=0 // pred_region
    _
  $region5: #{conv_block_forward.2} parent=0 // pred_fallthru
    _
  // Predicated region
  $region6: #{conv_block_forward.2} parent=0 // pred_check
    _
  $region7: #{conv_block_forward.2} parent=0 // pred_check_branch
    %13 = sbr.rel (0) target = $region9
  $region8: #{conv_block_forward.2} parent=0 // pred_region
    _
  $region9: #{conv_block_forward.2} parent=0 // pred_fallthru
    _
  %v15 = vld [vmem:[%s0] sm:$0xf]
  %v16 = vld [vmem:[%s0 + $0x4] sm:$0xf]
  %v17 = vld [vmem:[%s0 + $0x8] sm:$0xf]
  %v18 = vld [vmem:[%s0 + $0xc] sm:$0xf]
  %v19 = vld [vmem:[%s0 + $0x10] sm:$0xf]
  %v20 = vld [vmem:[%s0 + $0x14] sm:$0xf]
  %v21 = vld [vmem:[%s0 + $0x18] sm:$0xf]
  %v22 = vld [vmem:[%s0 + $0x1c] sm:$0xf]
  %v23 = vld [vmem:[%s0 + $0x20] sm:$0xf]
  %v24 = vld [vmem:[%s0 + $0x24] sm:$0xf]
  %v25 = vld [vmem:[%s0 + $0x28] sm:$0xf]
  %v26 = vld [vmem:[%s0 + $0x2c] sm:$0xf]
  %v27 = vld [vmem:[%s0 + $0x30] sm:$0xf]
  %v28 = vld [vmem:[%s0 + $0x34] sm:$0xf]
  %v29 = vld [vmem:[%s0 + $0x38] sm:$0xf]
  %v30 = vld [vmem:[%s0 + $0x3c] sm:$0xf]
  %v31 = vld [vmem:[%s1] sm:$0xf]
  %v32 = vld [vmem:[%s1 + $0x4] sm:$0xf]
  %v33 = vld [vmem:[%s1 + $0x8] sm:$0xf]
  %v34 = vld [vmem:[%s1 + $0xc] sm:$0xf]
  %v35 = vld [vmem:[%s1 + $0x10] sm:$0xf]
  %v36 = vld [vmem:[%s1 + $0x14] sm:$0xf]
  %v37 = vld [vmem:[%s1 + $0x18] sm:$0xf]
  %v38 = vld [vmem:[%s1 + $0x1c] sm:$0xf]
  %v55 = vunpack.c.l.b16 %v15
  %v56 = vunpack.c.l.b16 %v16
  %v57 = vunpack.c.l.b16 %v17
  %v58 = vunpack.c.l.b16 %v18
  %v59 = vunpack.c.l.b16 %v19
  %v60 = vunpack.c.l.b16 %v20
  %v61 = vunpack.c.l.b16 %v21
  %v62 = vunpack.c.l.b16 %v22
  %v63 = vunpack.c.l.b16 %v23
  %v64 = vunpack.c.l.b16 %v24
  %v65 = vunpack.c.l.b16 %v25
  %v66 = vunpack.c.l.b16 %v26
  %v67 = vunpack.c.l.b16 %v27
  %v68 = vunpack.c.l.b16 %v28
  %v69 = vunpack.c.l.b16 %v29
  %v70 = vunpack.c.l.b16 %v30
  %v71 = vpack.c.b16 %v56, %v55
  %v72 = vpack.c.b16 %v58, %v57
  %v73 = vpack.c.b16 %v60, %v59
  %v74 = vpack.c.b16 %v62, %v61
  %v75 = vpack.c.b16 %v64, %v63
  %v76 = vpack.c.b16 %v66, %v65
  %v77 = vpack.c.b16 %v68, %v67
  %v78 = vpack.c.b16 %v70, %v69
  %v87 = vunpack.c.l.b16 %v31
  %v88 = vunpack.c.l.b16 %v32
  %v89 = vunpack.c.l.b16 %v33
  %v90 = vunpack.c.l.b16 %v34
  %v91 = vunpack.c.l.b16 %v35
  %v92 = vunpack.c.l.b16 %v36
  %v93 = vunpack.c.l.b16 %v37
  %v94 = vunpack.c.l.b16 %v38
  %v95 = vpack.c.b16 %v88, %v87
  %v96 = vpack.c.b16 %v90, %v89
  %v97 = vpack.c.b16 %v92, %v91
  %v98 = vpack.c.b16 %v94, %v93
  %vm103 = vcmask 523264
  %v105 = vsel %vm103, %v71, 0
  %v108 = vsel %vm103, %v72, 0
  %v111 = vsel %vm103, %v73, 0
  %v114 = vsel %vm103, %v74, 0
  %v117 = vsel %vm103, %v75, 0
  %v120 = vsel %vm103, %v76, 0
  %v123 = vsel %vm103, %v77, 0
  %v126 = vsel %vm103, %v78, 0
  %128 = vmatprep.subr.bf16.mxu0 0
  %129 = vmatpush1.bf16.msra.mxu0 0
  %130 = vmatprep.subr.bf16.mxu0 0
  %131 = vmatpush1.bf16.msra.mxu0 0
  %132 = vmatprep.subr.bf16.mxu0 0
  %133 = vmatpush1.bf16.msra.mxu0 0
  %134 = vmatprep.subr.bf16.mxu0 0
  %135 = vmatpush1.bf16.msra.mxu0 0
  %136 = vmatprep.subr.bf16.mxu0 0
  %137 = vmatpush1.bf16.msra.mxu0 %v98
  %138 = vmatprep.subr.bf16.mxu0 0
  %139 = vmatpush1.bf16.msra.mxu0 %v97
  %140 = vmatprep.subr.bf16.mxu0 0
  %141 = vmatpush1.bf16.msra.mxu0 %v96
  %142 = vmatprep.subr.bf16.mxu0 0
  %143 = vmatpush1.bf16.msra.mxu0 %v95
  %144 = vmatprep.subr.bf16.mxu0 0
  %145 = vmatpush2.bf16.msra.mxu0 0
  %146 = vmatprep.subr.bf16.mxu0 0
  %147 = vmatpush2.bf16.msra.mxu0 0
  %148 = vmatprep.subr.bf16.mxu0 0
  %149 = vmatpush2.bf16.msra.mxu0 0
  %150 = vmatprep.subr.bf16.mxu0 0
  %151 = vmatpush2.bf16.msra.mxu0 0
  %152 = vmatprep.subr.bf16.mxu0 0
  %153 = vmatpush2.bf16.msra.mxu0 0
  %154 = vmatprep.subr.bf16.mxu0 0
  %155 = vmatpush2.bf16.msra.mxu0 0
  %156 = vmatprep.subr.bf16.mxu0 0
  %157 = vmatpush2.bf16.msra.mxu0 0
  %158 = vmatprep.subr.bf16.mxu0 0
  %159 = vmatpush2.bf16.msra.mxu0 0
  %160 = vmatprep.mubr.bf16.mxu0 0
  %161 = vmatmul.mubr.bf16.gmra.mxu0 %v105
  %v162 = vpop.f32.mrf.mxu0
  %v163 = vadd.f32 0.0, %v162
  %v164 = vpop.f32.mrf.mxu0
  %v165 = vpop.f32.mrf.mxu0
  %v166 = vadd.f32 0.0, %v165
  %v167 = vpop.f32.mrf.mxu0
  %168 = vmatprep.mubr.bf16.mxu0 0
  %169 = vmatmul.mubr.bf16.gmra.mxu0 %v108
  %v170 = vpop.f32.mrf.mxu0
  %v171 = vadd.f32 0.0, %v170
  %v172 = vpop.f32.mrf.mxu0
  %v173 = vpop.f32.mrf.mxu0
  %v174 = vadd.f32 0.0, %v173
  %v175 = vpop.f32.mrf.mxu0
  %176 = vmatprep.mubr.bf16.mxu0 0
  %177 = vmatmul.mubr.bf16.gmra.mxu0 %v111
  %v178 = vpop.f32.mrf.mxu0
  %v179 = vadd.f32 0.0, %v178
  %v180 = vpop.f32.mrf.mxu0
  %v181 = vpop.f32.mrf.mxu0
  %v182 = vadd.f32 0.0, %v181
  %v183 = vpop.f32.mrf.mxu0
  %184 = vmatprep.mubr.bf16.mxu0 0
  %185 = vmatmul.mubr.bf16.gmra.mxu0 %v114
  %v186 = vpop.f32.mrf.mxu0
  %v187 = vadd.f32 0.0, %v186
  %v188 = vpop.f32.mrf.mxu0
  %v189 = vpop.f32.mrf.mxu0
  %v190 = vadd.f32 0.0, %v189
  %v191 = vpop.f32.mrf.mxu0
  %192 = vmatprep.mubr.bf16.mxu0 0
  %193 = vmatmul.mubr.bf16.gmra.mxu0 %v117
  %v194 = vpop.f32.mrf.mxu0
  %v195 = vadd.f32 0.0, %v194
  %v196 = vpop.f32.mrf.mxu0
  %v197 = vpop.f32.mrf.mxu0
  %v198 = vadd.f32 0.0, %v197
  %v199 = vpop.f32.mrf.mxu0
  %200 = vmatprep.mubr.bf16.mxu0 0
  %201 = vmatmul.mubr.bf16.gmra.mxu0 %v120
  %v202 = vpop.f32.mrf.mxu0
  %v203 = vadd.f32 0.0, %v202
  %v204 = vpop.f32.mrf.mxu0
  %v205 = vpop.f32.mrf.mxu0
  %v206 = vadd.f32 0.0, %v205
  %v207 = vpop.f32.mrf.mxu0
  %208 = vmatprep.mubr.bf16.mxu0 0
  %209 = vmatmul.mubr.bf16.gmra.mxu0 %v123
  %v210 = vpop.f32.mrf.mxu0
  %v211 = vadd.f32 0.0, %v210
  %v212 = vpop.f32.mrf.mxu0
  %v213 = vpop.f32.mrf.mxu0
  %v214 = vadd.f32 0.0, %v213
  %v215 = vpop.f32.mrf.mxu0
  %216 = vmatprep.mubr.bf16.mxu0 0
  %217 = vmatmul.mubr.bf16.gmra.mxu0 %v126
  %v218 = vpop.f32.mrf.mxu0
  %v219 = vadd.f32 0.0, %v218
  %v220 = vpop.f32.mrf.mxu0
  %v221 = vpop.f32.mrf.mxu0
  %v222 = vadd.f32 0.0, %v221
  %v223 = vpop.f32.mrf.mxu0
  %224 = vdwg.mxu0
  %225 = vst [vmem:[%s2] sm:$0xff] %v163
  %226 = vst [vmem:[%s2 + $0x8] sm:$0xff] %v166
  %227 = vst [vmem:[%s2 + $0x10] sm:$0xff] %v171
  %228 = vst [vmem:[%s2 + $0x18] sm:$0xff] %v174
  %229 = vst [vmem:[%s2 + $0x20] sm:$0xff] %v179
  %230 = vst [vmem:[%s2 + $0x28] sm:$0xff] %v182
  %231 = vst [vmem:[%s2 + $0x30] sm:$0xff] %v187
  %232 = vst [vmem:[%s2 + $0x38] sm:$0xff] %v190
  %233 = vst [vmem:[%s2 + $0x40] sm:$0xff] %v195
  %234 = vst [vmem:[%s2 + $0x48] sm:$0xff] %v198
  %235 = vst [vmem:[%s2 + $0x50] sm:$0xff] %v203
  %236 = vst [vmem:[%s2 + $0x58] sm:$0xff] %v206
  %237 = vst [vmem:[%s2 + $0x60] sm:$0xff] %v211
  %238 = vst [vmem:[%s2 + $0x68] sm:$0xff] %v214
  %239 = vst [vmem:[%s2 + $0x70] sm:$0xff] %v219
  %240 = vst [vmem:[%s2 + $0x78] sm:$0xff] %v222
  %v241 = vadd.f32 %v163, %v166
  %v242 = vadd.f32 %v241, %v171
  %v243 = vadd.f32 %v242, %v174
  %v244 = vadd.f32 %v243, %v179
  %v245 = vadd.f32 %v244, %v182
  %v246 = vadd.f32 %v245, %v187
  %v247 = vadd.f32 %v246, %v190
  %v248 = vadd.f32 %v247, %v195
  %v249 = vadd.f32 %v248, %v198
  %v250 = vadd.f32 %v249, %v203
  %v251 = vadd.f32 %v250, %v206
  %v252 = vadd.f32 %v251, %v211
  %v253 = vadd.f32 %v252, %v214
  %v254 = vadd.f32 %v253, %v219
  %v255 = vadd.f32 %v254, %v222
  %v256 = vrot.slane %v255, 4
  %v257 = vadd.f32 %v255, %v256
  %v258 = vrot.slane %v257, 2
  %v259 = vadd.f32 %v257, %v258
  %v260 = vrot.slane %v259, 1
  %v261 = vadd.f32 %v259, %v260
  %v262 = vmul.f32 %v163, %v163
  %v263 = vmul.f32 %v166, %v166
  %v264 = vmul.f32 %v171, %v171
  %v265 = vmul.f32 %v174, %v174
  %v266 = vmul.f32 %v179, %v179
  %v267 = vmul.f32 %v182, %v182
  %v268 = vmul.f32 %v187, %v187
  %v269 = vmul.f32 %v190, %v190
  %v270 = vmul.f32 %v195, %v195
  %v271 = vmul.f32 %v198, %v198
  %v272 = vmul.f32 %v203, %v203
  %v273 = vmul.f32 %v206, %v206
  %v274 = vmul.f32 %v211, %v211
  %v275 = vmul.f32 %v214, %v214
  %v276 = vmul.f32 %v219, %v219
  %v277 = vmul.f32 %v222, %v222
  %v278 = vadd.f32 %v262, %v263
  %v279 = vadd.f32 %v278, %v264
  %v280 = vadd.f32 %v279, %v265
  %v281 = vadd.f32 %v280, %v266
  %v282 = vadd.f32 %v281, %v267
  %v283 = vadd.f32 %v282, %v268
  %v284 = vadd.f32 %v283, %v269
  %v285 = vadd.f32 %v284, %v270
  %v286 = vadd.f32 %v285, %v271
  %v287 = vadd.f32 %v286, %v272
  %v288 = vadd.f32 %v287, %v273
  %v289 = vadd.f32 %v288, %v274
  %v290 = vadd.f32 %v289, %v275
  %v291 = vadd.f32 %v290, %v276
  %v292 = vadd.f32 %v291, %v277
  %v293 = vrot.slane %v292, 4
  %v294 = vadd.f32 %v292, %v293
  %v295 = vrot.slane %v294, 2
  %v296 = vadd.f32 %v294, %v295
  %v297 = vrot.slane %v296, 1
  %v298 = vadd.f32 %v296, %v297
  %299 = vst [vmem:[%s3] sm:$0xff] %v261
  %300 = vst [vmem:[%s4] sm:$0xff] %v298
  // Predicated region
  $region10: #{conv_block_forward.2} parent=0 // pred_check
    _
  $region11: #{conv_block_forward.2} parent=0 // pred_check_branch
    %302 = sbr.rel (0) target = $region13
  $region12: #{conv_block_forward.2} parent=0 // pred_region
    _
  $region13: #{conv_block_forward.2} parent=0 // pred_fallthru
    _
  // Predicated region
  $region14: #{conv_block_forward.2} parent=0 // pred_check
    _
  $region15: #{conv_block_forward.2} parent=0 // pred_check_branch
    %304 = sbr.rel (0) target = $region17
  $region16: #{conv_block_forward.2} parent=0 // pred_region
    _
  $region17: #{conv_block_forward.2} parent=0 // pred_fallthru
    _
  // Predicated region
  $region18: #{conv_block_forward.2} parent=0 // pred_check
    _
  $region19: #{conv_block_forward.2} parent=0 // pred_check_branch
    %306 = sbr.rel (0) target = $region21
  $region20: #{conv_block_forward.2} parent=0 // pred_region
    _
  $region21: #{conv_block_forward.2} parent=0 // pred_fallthru
    _
  // Predicated region
  $region22: #{conv_block_forward.2} parent=0 // pred_check
    _
  $region23: #{conv_block_forward.2} parent=0 // pred_check_branch
    %308 = sbr.rel (0) target = $region25
  $region24: #{conv_block_forward.2} parent=0 // pred_region
    _
  $region25: #{conv_block_forward.2} parent=0 // pred_fallthru
    _
  // Predicated region
  $region26: #{conv_block_forward.2} parent=0 // pred_check
    _
  $region27: #{conv_block_forward.2} parent=0 // pred_check_branch
    %310 = sbr.rel (0) target = $region29
  $region28: #{conv_block_forward.2} parent=0 // pred_region
    _
  $region29: #{conv_block_forward.2} parent=0 // pred_fallthru
    _
  // Predicated region
  $region30: #{conv_block_forward.2} parent=0 // pred_check
    _
  $region31: #{conv_block_forward.2} parent=0 // pred_check_branch
    %312 = sbr.rel (0) target = $region33
  $region32: #{conv_block_forward.2} parent=0 // pred_region
    _
  $region33: #{conv_block_forward.2} parent=0 // pred_fallthru
    _

</llo_original>
